<compile_context>
chip_gen: v6e
topology: v6e:2x2x1
jax: 0.10.0
libtpu: 0.0.40
codegen_flags: <defaults>
</compile_context>

<pallas_src>
import functools

import numpy as np
import jax
import jax.numpy as jnp
from jax import lax
from jax.experimental import pallas as pl
from jax.experimental.pallas import tpu as pltpu


_LANE = 128
_SUBLANE = 8
_BIG_ENT = 1e30                      # sentinel entropy for padded support slots


def _round_up(x, m):
    return (x + m - 1) // m * m


@functools.lru_cache(maxsize=None)
def _vmem_budget():
    """Generation-aware VMEM budget (bytes) for tile planning / vmem_limit."""
    cap = None
    try:
        cap = getattr(pltpu.get_tpu_info(), "vmem_capacity_bytes", None)
    except Exception:
        cap = None
    if not cap:
        cap = 64 * 1024 * 1024       # conservative (v7x-sized) fallback
    # ~72% of physical, capped at 100 MiB: ~46 MiB on v7x, ~92 MiB on v5e/v6e.
    return min(int(cap * 0.72), 100 * 1024 * 1024)


def _pick_batch_tile(n, cap):
    """Batch tile: full n if it fits, else a multiple of 8 (divisor preferred,
    otherwise ragged last block via pl.cdiv grid — OOB writes are masked)."""
    if n <= cap:
        return n
    cap = max(_SUBLANE, (cap // _SUBLANE) * _SUBLANE)
    t = cap
    while t >= max(_SUBLANE, cap // 2):
        if n % t == 0:
            return t
        t -= _SUBLANE
    return cap


def _pick_class_tile(kpad, cap):
    """Tile for the (x128-padded) class axis: full if it fits, else a x128 divisor."""
    if kpad <= cap:
        return kpad
    t = max(_LANE, (cap // _LANE) * _LANE)
    while t >= _LANE:
        if kpad % t == 0:
            return t
        t -= _LANE
    return kpad


# ----------------------------------------------------------------------------
# Kernel A: fused adaptive-avgpool(1x1) + flatten + fc + softmax-entropy
#   x tile (tn, C, hw_t): HW lane-dense, pool reduces over lanes into a
#   resident (tn, C) fp32 accumulator (grid axis 1 = HW tiles, "arbitrary").
#   On the last HW step:  p = z @ W^T + b  (W padded to Kpad = round_up(K,128)
#   zero rows, bf16), entropy over the valid K columns only, emitted as a
#   lane-dense (tn, 128) slab.
# ----------------------------------------------------------------------------
def _pool_fc_entropy_kernel(x_ref, w_ref, b_ref, z_ref, p_ref, ent_ref,
                            acc_ref, *, num_classes, inv_hw, hw_total, mask_hw):
    hw_step = pl.program_id(1)

    @pl.when(hw_step == 0)
    def _init():
        acc_ref[...] = jnp.zeros_like(acc_ref)

    x = x_ref[...]                                            # (tn, C, hw_t)
    if mask_hw:
        # ragged last HW block: zero the out-of-range lanes before the pool sum
        col = lax.broadcasted_iota(jnp.int32, x.shape, 2)
        x = jnp.where(hw_step * x_ref.shape[2] + col < hw_total, x, 0)
    # fp32 accumulation without materializing an fp32 copy of the x tile
    acc_ref[...] += jnp.sum(x, axis=2, dtype=jnp.float32)

    @pl.when(hw_step == pl.num_programs(1) - 1)
    def _finalize():
        z = acc_ref[...] * jnp.float32(inv_hw)                # (tn, C) fp32
        z_ref[...] = z.astype(z_ref.dtype)

        w = w_ref[...]                                        # (Kpad, C) bf16
        zmm = z if w.dtype == jnp.float32 else z.astype(w.dtype)
        # p = z @ W^T + b : contract on C, neither operand needs a transpose
        p = lax.dot_general(zmm, w, (((1,), (1,)), ((), ())),
                            preferred_element_type=jnp.float32)
        p = p + b_ref[...].astype(jnp.float32)                # (tn, Kpad)
        p_ref[...] = p

        # softmax entropy restricted to the valid class columns (Kpad >= K)
        col = lax.broadcasted_iota(jnp.int32, p.shape, 1)
        valid = col < num_classes
        p_m = jnp.where(valid, p, jnp.float32(-1e30))
        m = jnp.max(p_m, axis=1, keepdims=True)
        e = jnp.where(valid, jnp.exp(p - m), jnp.float32(0.0))
        s = jnp.sum(e, axis=1, keepdims=True)
        inv_s = pl.reciprocal(s, approx=True)                 # EUP, not VALU
        log_sm = (p - m) - jnp.log(s)
        ent = -jnp.sum(jnp.where(valid, (e * inv_s) * log_sm, jnp.float32(0.0)),
                       axis=1, keepdims=True)
        ent_ref[...] = jnp.broadcast_to(ent, ent_ref.shape)   # lane-dense slab


@functools.partial(jax.jit, static_argnames=("num_classes",))
def pool_fc_entropy(x_nchw, w_pad, b_pad, *, num_classes):
    """Fused avgpool(1x1) + flatten + fc + softmax-entropy.

    x_nchw: (N, C, H, W); w_pad: (Kpad, C) (bf16); b_pad: (1, Kpad) fp32.
    returns: z (N, C) fp32,  p (N, K) fp32 logits,  ent (N,) fp32
    Note: logits carry w_pad's (bf16) precision; argmax / entropy are robust.
    """
    N, C, H, W = x_nchw.shape
    HW = H * W
    Kpad = w_pad.shape[0]
    x = x_nchw.reshape(N, C, HW)            # free reshape — no HBM transpose

    budget = _vmem_budget()
    x_bytes = jnp.dtype(x.dtype).itemsize
    block_budget = max(budget // 3, 4 * 1024 * 1024)   # x is double-buffered

    def tn_cap(hw_t):
        return max(_SUBLANE, block_budget // max(1, 2 * C * hw_t * x_bytes))

    hw_t = HW
    if HW > _LANE and tn_cap(HW) < 2 * _SUBLANE:
        # full-HW rows too fat for a useful batch tile: tile the spatial axis
        hw_cap = max(1, block_budget // max(1, 2 * C * 64 * x_bytes))
        hw_t = max(_LANE, (min(hw_cap, HW) // _LANE) * _LANE)
    tn = _pick_batch_tile(N, min(tn_cap(hw_t), 256))
    mask_hw = (HW % hw_t) != 0
    grid = (pl.cdiv(N, tn), pl.cdiv(HW, hw_t))

    kern = functools.partial(_pool_fc_entropy_kernel, num_classes=num_classes,
                             inv_hw=1.0 / HW, hw_total=HW, mask_hw=mask_hw)
    z, p, ent = pl.pallas_call(
        kern,
        out_shape=(jax.ShapeDtypeStruct((N, C), jnp.float32),
                   jax.ShapeDtypeStruct((N, Kpad), jnp.float32),
                   jax.ShapeDtypeStruct((N, _LANE), jnp.float32)),
        grid=grid,
        in_specs=[pl.BlockSpec((tn, C, hw_t), lambda i, h: (i, 0, h)),
                  pl.BlockSpec((Kpad, C), lambda i, h: (0, 0)),
                  pl.BlockSpec((1, Kpad), lambda i, h: (0, 0))],
        out_specs=(pl.BlockSpec((tn, C), lambda i, h: (i, 0)),
                   pl.BlockSpec((tn, Kpad), lambda i, h: (i, 0)),
                   pl.BlockSpec((tn, _LANE), lambda i, h: (i, 0))),
        scratch_shapes=[pltpu.VMEM((tn, C), jnp.float32)],
        compiler_params=pltpu.CompilerParams(
            dimension_semantics=("parallel", "arbitrary"),
            vmem_limit_bytes=budget),
    )(x, w_pad, b_pad)
    return z, p[:, :num_classes], ent[:, 0]


# ----------------------------------------------------------------------------
# Kernel B: T3A classification head.
#   grid = (class tiles "parallel", support tiles "arbitrary")
#   per S tile : row-normalize supports, accumulate w^T += labels^T @ sup_n
#                (bf16 MXU operands, fp32 accumulator)
#   last step  : row-normalize w^T over C (== column-normalize weights),
#                out = z @ weights
# ----------------------------------------------------------------------------
def _classify_kernel(z_ref, sup_ref, lab_ref, out_ref, w_acc):
    s_step = pl.program_id(1)

    @pl.when(s_step == 0)
    def _init():
        w_acc[...] = jnp.zeros_like(w_acc)

    sup = sup_ref[...].astype(jnp.float32)                    # (ts, C)
    # F.normalize(supports, dim=1): local to this S tile (full C per row).
    inv_n = lax.rsqrt(jnp.maximum(jnp.sum(sup * sup, axis=1, keepdims=True),
                                  jnp.float32(1e-24)))
    sup_n = sup * inv_n

    # weights^T += labels^T @ supports_n  -> (tk, C).  Contraction on dim 0 of
    # both operands: no transpose of the big supports tile.  bf16 operands
    # (one-hot labels are exact in bf16), fp32 accumulation.
    w_acc[...] += lax.dot_general(
        lab_ref[...].astype(jnp.bfloat16), sup_n.astype(jnp.bfloat16),
        (((0,), (0,)), ((), ())), preferred_element_type=jnp.float32)

    @pl.when(s_step == pl.num_programs(1) - 1)
    def _finalize():
        w_t = w_acc[...]                                      # weights^T (tk, C)
        # F.normalize(weights, dim=0) == row-normalize weights^T over C.
        inv_c = lax.rsqrt(jnp.maximum(jnp.sum(w_t * w_t, axis=1, keepdims=True),
                                      jnp.float32(1e-24)))
        w_n = w_t * inv_c
        z = z_ref[...].astype(jnp.float32)
        out = lax.dot_general(z, w_n, (((1,), (1,)), ((), ())),
                              preferred_element_type=jnp.float32)
        out_ref[...] = out.astype(out_ref.dtype)


@jax.jit
def t3a_classify(z, supports, labels):
    """out = z @ normalize(normalize(supports, 1).T @ labels, dim=0)."""
    N, C = z.shape
    S, K = labels.shape
    Kpad = _round_up(K, _LANE)
    budget = _vmem_budget()

    tk = _pick_class_tile(Kpad, 512)
    sup_bytes = jnp.dtype(supports.dtype).itemsize
    # VMEM plan: 2x sup block + 2x lab block + w_acc + 2x z + 2x out tiles.
    fixed = tk * C * 4 + 2 * N * C * 4 + 2 * N * tk * 4
    per_row = 2 * C * sup_bytes + 2 * tk * 4
    ts = max(_SUBLANE, (budget - fixed) // max(1, per_row))
    ts = min(ts, 1024, _round_up(S, _SUBLANE))
    ts = max(_SUBLANE, (ts // _SUBLANE) * _SUBLANE)
    S_pad = _round_up(S, ts)

    # Zero padding is exact: zero support rows normalize to zero and zero label
    # rows add nothing to the class templates.
    sup_p = jnp.zeros((S_pad, C), supports.dtype).at[:S, :].set(supports)
    lab_p = jnp.zeros((S_pad, Kpad), jnp.float32).at[:S, :K].set(
        labels.astype(jnp.float32))

    out = pl.pallas_call(
        _classify_kernel,
        out_shape=jax.ShapeDtypeStruct((N, Kpad), jnp.float32),
        grid=(Kpad // tk, S_pad // ts),
        in_specs=[pl.BlockSpec((N, C), lambda kc, s: (0, 0)),
                  pl.BlockSpec((ts, C), lambda kc, s: (s, 0)),
                  pl.BlockSpec((ts, tk), lambda kc, s: (s, kc))],
        out_specs=pl.BlockSpec((N, tk), lambda kc, s: (0, kc)),
        scratch_shapes=[pltpu.VMEM((tk, C), jnp.float32)],
        compiler_params=pltpu.CompilerParams(
            dimension_semantics=("parallel", "arbitrary"),
            vmem_limit_bytes=budget),
    )(z, sup_p, lab_p)
    return out[:, :K]


# ----------------------------------------------------------------------------
# Device-side select_supports (no host sync): per-class lowest-entropy top-K,
# returned at fixed capacity num_classes * k with zero-padded invalid slots.
# ----------------------------------------------------------------------------
@functools.partial(jax.jit, static_argnums=(3, 4))
def _select_supports_device(supports, labels, ent, num_classes, filter_K):
    S = ent.shape[0]
    k = min(filter_K, S)
    y_hat = jnp.argmax(labels, axis=1)
    big = jnp.asarray(_BIG_ENT, dtype=ent.dtype)

    def per_class(c):
        scores = jnp.where(y_hat == c, ent, big)
        neg_top, idx = lax.top_k(-scores, k)        # k lowest-entropy rows of class c
        valid = (-neg_top) < (big * 0.5)            # False -> class had < k rows
        return idx, valid

    idx, valid = jax.vmap(per_class)(jnp.arange(num_classes))
    idx = idx.reshape(-1)
    valid = valid.reshape(-1)
    sup = jnp.where(valid[:, None], supports[idx], 0).astype(supports.dtype)
    lab = jnp.where(valid[:, None], labels[idx], 0).astype(labels.dtype)
    ent_sel = jnp.where(valid, ent[idx], big).astype(ent.dtype)
    return sup, lab, ent_sel


def _softmax_entropy_jnp(p):
    logp = jax.nn.log_softmax(p, axis=1)
    return -jnp.sum(jnp.exp(logp) * logp, axis=1)


# ----------------------------------------------------------------------------
# T3A algorithm (JAX port of the PyTorch module)
# ----------------------------------------------------------------------------
class T3AJax:
    def __init__(self, num_classes, fc_weight, fc_bias, filter_K):
        self.num_classes = num_classes
        self.filter_K = filter_K
        self.fc_weight = fc_weight          # (num_classes, feat_dim)
        self.fc_bias = fc_bias              # (num_classes,)

        K, C = fc_weight.shape
        Kpad = _round_up(K, _LANE)
        # Padded fc params prepared once (not per forward).  Weight kept bf16:
        # half the HBM/VMEM footprint and the MXU bf16 fast path.
        self._w_pad = jnp.zeros((Kpad, C), jnp.bfloat16).at[:K, :].set(
            fc_weight.astype(jnp.bfloat16))
        self._b_pad = jnp.zeros((1, Kpad), jnp.float32).at[0, :K].set(
            fc_bias.astype(jnp.float32))

        # warmup: fc applied to its own weight rows (tiny KxK problem — plain
        # JAX, exactly like the PyTorch reference, no kernel needed).
        w32 = fc_weight.astype(jnp.float32)
        warm_p = w32 @ w32.T + fc_bias.astype(jnp.float32)
        self.warmup_supports = fc_weight
        self.warmup_ent = _softmax_entropy_jnp(warm_p)
        self.warmup_labels = jax.nn.one_hot(
            jnp.argmax(warm_p, axis=1), num_classes, dtype=jnp.float32)

        self.supports = self.warmup_supports
        self.labels = self.warmup_labels
        self.ent = self.warmup_ent

    def select_supports(self):
        # Note: ties in entropy may resolve differently than torch.sort, but
        # the selected *set* (hence the classifier output) is identical.
        if self.filter_K is not None and self.filter_K > 0:
            self.supports, self.labels, self.ent = _select_supports_device(
                self.supports, self.labels, self.ent,
                self.num_classes, self.filter_K)
        # filter_K == -1: keep the full support set.
        # TODO(synk): with filter_K <= 0 and adapt=True the support set grows
        # every call (re-trace of t3a_classify); a fixed-capacity ring buffer
        # would bound the work and the recompiles.
        return self.supports, self.labels

    def forward(self, x, adapt=False):
        # TODO(synk): fun_extract / the ResNet backbone is not part of this
        # module; x is the pre-avgpool feature map (N, C, H, W).
        z, p, ent = pool_fc_entropy(x, self._w_pad, self._b_pad,
                                    num_classes=self.num_classes)
        if adapt:
            yhat = jax.nn.one_hot(jnp.argmax(p, axis=1),
                                  self.num_classes, dtype=jnp.float32)
            self.supports = jnp.concatenate(
                [self.supports, z.astype(self.supports.dtype)], axis=0)
            self.labels = jnp.concatenate([self.labels, yhat], axis=0)
            self.ent = jnp.concatenate([self.ent, ent], axis=0)
        supports, labels = self.select_supports()
        return t3a_classify(z, supports, labels)

    def predict(self, x, adapt=False):
        return self.forward(x, adapt)

    def reset(self):
        self.supports = self.warmup_supports
        self.labels = self.warmup_labels
        self.ent = self.warmup_ent


# ----------------------------------------------------------------------------
# Pure numpy reference for the adapt=False forward (mirrors the PyTorch code)
# ----------------------------------------------------------------------------
def _reference_forward_no_adapt(x, supports, labels, ent, num_classes, filter_K):
    N, C, H, W = x.shape
    z = np.asarray(x).reshape(N, C, H * W).mean(-1)
    ent_np = np.asarray(ent)
    lab_np = np.asarray(labels)
    sup_np = np.asarray(supports)
    y_hat = lab_np.argmax(1)
    picks = []
    for i in range(num_classes):
        cand = np.where(y_hat == i)[0]
        order = np.argsort(ent_np[cand], kind="stable")
        picks.append(cand[order][:filter_K])
    picks = np.concatenate(picks)
    sup = sup_np[picks]
    lab = lab_np[picks]
    sup_n = sup / np.maximum(np.linalg.norm(sup, axis=1, keepdims=True), 1e-12)
    w = sup_n.T @ lab
    w_n = w / np.maximum(np.linalg.norm(w, axis=0, keepdims=True), 1e-12)
    return z @ w_n


if __name__ == "__main__":
    key = jax.random.PRNGKey(0)
    N, C, H, W = 2, 32, 8, 8          # batch, feature channels, spatial
    num_classes = 4
    filter_K = 2

    k1, k2, k3 = jax.random.split(key, 3)
    fc_w = 0.1 * jax.random.normal(k1, (num_classes, C), dtype=jnp.float32)
    fc_b = 0.1 * jax.random.normal(k2, (num_classes,), dtype=jnp.float32)
    x = jax.random.normal(k3, (N, C, H, W), dtype=jnp.float32)

    algo = T3AJax(num_classes, fc_w, fc_b, filter_K)

    # snapshot of the state before forward (forward mutates it) for the reference
    sup0 = np.asarray(algo.supports)
    lab0 = np.asarray(algo.labels)
    ent0 = np.asarray(algo.ent)

    out_no_adapt = algo.forward(x, adapt=False)
    jax.block_until_ready(out_no_adapt)

    ref = _reference_forward_no_adapt(x, sup0, lab0, ent0, num_classes, filter_K)
    # bf16 MXU operands in the classify kernel -> slightly relaxed tolerance.
    np.testing.assert_allclose(np.asarray(out_no_adapt), ref, rtol=5e-3, atol=5e-3)

    out_adapt = algo.forward(x, adapt=True)
    jax.block_until_ready(out_adapt)

    assert out_no_adapt.shape == (N, num_classes)
    assert out_adapt.shape == (N, num_classes)
    assert bool(jnp.all(jnp.isfinite(out_no_adapt)))
    assert bool(jnp.all(jnp.isfinite(out_adapt)))
    print("KERNEL_OK")
</pallas_src>

<mosaic_0001>
module attributes {stable_mosaic.version = 11 : i64} {
  func.func @_pool_fc_entropy_kernel(%arg0: i32, %arg1: i32, %arg2: memref<2x32x64xf32, #tpu.memory_space<vmem>>, %arg3: memref<128x32xbf16, #tpu.memory_space<vmem>>, %arg4: memref<1x128xf32, #tpu.memory_space<vmem>>, %arg5: memref<2x32xf32, #tpu.memory_space<vmem>>, %arg6: memref<2x128xf32, #tpu.memory_space<vmem>>, %arg7: memref<2x128xf32, #tpu.memory_space<vmem>>, %arg8: memref<2x32xf32, #tpu.memory_space<vmem>>) attributes {dimension_semantics = [#tpu.dimension_semantics<parallel>, #tpu.dimension_semantics<arbitrary>], iteration_bounds = array<i64: 1, 1>, scalar_prefetch = 0 : i64, scratch_operands = 1 : i64, tpu.core_type = #tpu.core_type<tc>, window_params = [{transform_indices = @transform_0, window_bounds = array<i64: 2, 32, 64>}, {pipeline_mode = #tpu.pipeline_mode<synchronous>, transform_indices = @transform_1, window_bounds = array<i64: 128, 32>}, {pipeline_mode = #tpu.pipeline_mode<synchronous>, transform_indices = @transform_2, window_bounds = array<i64: 1, 128>}, {transform_indices = @transform_3, window_bounds = array<i64: 2, 32>}, {transform_indices = @transform_4, window_bounds = array<i64: 2, 128>}, {transform_indices = @transform_5, window_bounds = array<i64: 2, 128>}]} {
    %c0_i32 = arith.constant 0 : i32
    %0 = arith.cmpi eq, %arg1, %c0_i32 : i32
    %1 = arith.extui %0 : i1 to i32
    %c0_i32_0 = arith.constant 0 : i32
    %2 = arith.cmpi ne, %1, %c0_i32_0 : i32
    scf.if %2 {
      %cst_9 = arith.constant 0.000000e+00 : f32
      %11 = vector.broadcast %cst_9 : f32 to vector<2x32xf32>
      %c0_10 = arith.constant 0 : index
      %c0_11 = arith.constant 0 : index
      %12 = vector.load %arg8[%c0_10, %c0_11] : memref<2x32xf32, #tpu.memory_space<vmem>>, vector<2x32xf32>
      tpu.vector_store %arg8[%c0_10, %c0_11], %11 {strides = array<i32>} : memref<2x32xf32, #tpu.memory_space<vmem>>, vector<2x32xf32>,
    } else {
    }
    %c0 = arith.constant 0 : index
    %c0_1 = arith.constant 0 : index
    %c0_2 = arith.constant 0 : index
    %3 = vector.load %arg2[%c0, %c0_1, %c0_2] : memref<2x32x64xf32, #tpu.memory_space<vmem>>, vector<2x32x64xf32>
    %c0_3 = arith.constant 0 : index
    %c0_4 = arith.constant 0 : index
    %4 = vector.load %arg8[%c0_3, %c0_4] : memref<2x32xf32, #tpu.memory_space<vmem>>, vector<2x32xf32>
    %cst = arith.constant dense<0.000000e+00> : vector<2x32xf32>
    %5 = vector.multi_reduction <add>, %3, %cst [2] : vector<2x32x64xf32> to vector<2x32xf32>
    %6 = arith.addf %4, %5 : vector<2x32xf32>
    %c0_5 = arith.constant 0 : index
    %c0_6 = arith.constant 0 : index
    %7 = vector.load %arg8[%c0_5, %c0_6] : memref<2x32xf32, #tpu.memory_space<vmem>>, vector<2x32xf32>
    tpu.vector_store %arg8[%c0_5, %c0_6], %6 {strides = array<i32>} : memref<2x32xf32, #tpu.memory_space<vmem>>, vector<2x32xf32>,
    %c0_i32_7 = arith.constant 0 : i32
    %8 = arith.cmpi eq, %arg1, %c0_i32_7 : i32
    %9 = arith.extui %8 : i1 to i32
    %c0_i32_8 = arith.constant 0 : i32
    %10 = arith.cmpi ne, %9, %c0_i32_8 : i32
    scf.if %10 {
      %c0_9 = arith.constant 0 : index
      %c0_10 = arith.constant 0 : index
      %11 = vector.load %arg8[%c0_9, %c0_10] : memref<2x32xf32, #tpu.memory_space<vmem>>, vector<2x32xf32>
      %cst_11 = arith.constant 1.562500e-02 : f32
      %12 = vector.broadcast %cst_11 : f32 to vector<2x32xf32>
      %13 = arith.mulf %11, %12 : vector<2x32xf32>
      %c0_12 = arith.constant 0 : index
      %c0_13 = arith.constant 0 : index
      %14 = vector.load %arg5[%c0_12, %c0_13] : memref<2x32xf32, #tpu.memory_space<vmem>>, vector<2x32xf32>
      tpu.vector_store %arg5[%c0_12, %c0_13], %13 {strides = array<i32>} : memref<2x32xf32, #tpu.memory_space<vmem>>, vector<2x32xf32>,
      %c0_14 = arith.constant 0 : index
      %c0_15 = arith.constant 0 : index
      %15 = vector.load %arg3[%c0_14, %c0_15] : memref<128x32xbf16, #tpu.memory_space<vmem>>, vector<128x32xbf16>
      %16 = arith.truncf %13 : vector<2x32xf32> to vector<2x32xbf16>
      %cst_16 = arith.constant dense<0.000000e+00> : vector<2x128xf32>
      %17 = tpu.matmul %16, %15, %cst_16 {dimension_numbers = #tpu.dot_dimension_numbers<[1], [1], [0], [0], [0, 0, 1, 0], [], []>} : vector<2x32xbf16>, vector<128x32xbf16>, vector<2x128xf32> -> vector<2x128xf32>
      %c0_17 = arith.constant 0 : index
      %c0_18 = arith.constant 0 : index
      %18 = vector.load %arg4[%c0_17, %c0_18] : memref<1x128xf32, #tpu.memory_space<vmem>>, vector<1x128xf32>
      %19 = vector.broadcast %18 : vector<1x128xf32> to vector<2x128xf32>
      %20 = arith.addf %17, %19 : vector<2x128xf32>
      %c0_19 = arith.constant 0 : index
      %c0_20 = arith.constant 0 : index
      %21 = vector.load %arg6[%c0_19, %c0_20] : memref<2x128xf32, #tpu.memory_space<vmem>>, vector<2x128xf32>
      tpu.vector_store %arg6[%c0_19, %c0_20], %20 {strides = array<i32>} : memref<2x128xf32, #tpu.memory_space<vmem>>, vector<2x128xf32>,
      %22 = tpu.iota {dimensions = array<i32: 1>} : vector<2x128xi32>
      %c4_i32 = arith.constant 4 : i32
      %23 = vector.broadcast %c4_i32 : i32 to vector<2x128xi32>
      %24 = arith.cmpi slt, %22, %23 : vector<2x128xi32>
      %cst_21 = arith.constant -1.000000e+30 : f32
      %25 = vector.broadcast %cst_21 : f32 to vector<2x128xf32>
      %26 = arith.select %24, %20, %25 : vector<2x128xi1>, vector<2x128xf32>
      %cst_22 = arith.constant dense<0xFF800000> : vector<2xf32>
      %27 = vector.multi_reduction <maximumf>, %26, %cst_22 [1] : vector<2x128xf32> to vector<2xf32>
      %28 = vector.shape_cast %27 : vector<2xf32> to vector<2x1xf32>
      %29 = vector.broadcast %28 : vector<2x1xf32> to vector<2x128xf32>
      %30 = arith.subf %20, %29 : vector<2x128xf32>
      %31 = math.exp %30 : vector<2x128xf32>
      %cst_23 = arith.constant 0.000000e+00 : f32
      %32 = vector.broadcast %cst_23 : f32 to vector<2x128xf32>
      %33 = arith.select %24, %31, %32 : vector<2x128xi1>, vector<2x128xf32>
      %cst_24 = arith.constant dense<0.000000e+00> : vector<2xf32>
      %34 = vector.multi_reduction <add>, %33, %cst_24 [1] : vector<2x128xf32> to vector<2xf32>
      %35 = vector.shape_cast %34 : vector<2xf32> to vector<2x1xf32>
      %36 = tpu.reciprocal %35 {approx = true} : vector<2x1xf32> -> vector<2x1xf32>
      %37 = vector.broadcast %28 : vector<2x1xf32> to vector<2x128xf32>
      %38 = arith.subf %20, %37 : vector<2x128xf32>
      %39 = math.log %35 : vector<2x1xf32>
      %40 = vector.broadcast %39 : vector<2x1xf32> to vector<2x128xf32>
      %41 = arith.subf %38, %40 : vector<2x128xf32>
      %42 = vector.broadcast %36 : vector<2x1xf32> to vector<2x128xf32>
      %43 = arith.mulf %33, %42 : vector<2x128xf32>
      %44 = arith.mulf %43, %41 : vector<2x128xf32>
      %cst_25 = arith.constant 0.000000e+00 : f32
      %45 = vector.broadcast %cst_25 : f32 to vector<2x128xf32>
      %46 = arith.select %24, %44, %45 : vector<2x128xi1>, vector<2x128xf32>
      %cst_26 = arith.constant dense<0.000000e+00> : vector<2xf32>
      %47 = vector.multi_reduction <add>, %46, %cst_26 [1] : vector<2x128xf32> to vector<2xf32>
      %48 = vector.shape_cast %47 : vector<2xf32> to vector<2x1xf32>
      %cst_27 = arith.constant 0.000000e+00 : f32
      %49 = vector.broadcast %cst_27 : f32 to vector<2x1xf32>
      %50 = arith.subf %49, %48 : vector<2x1xf32>
      %51 = vector.shape_cast %50 : vector<2x1xf32> to vector<2x1xf32>
      %52 = vector.broadcast %51 : vector<2x1xf32> to vector<2x128xf32>
      %c0_28 = arith.constant 0 : index
      %c0_29 = arith.constant 0 : index
      %53 = vector.load %arg7[%c0_28, %c0_29] : memref<2x128xf32, #tpu.memory_space<vmem>>, vector<2x128xf32>
      tpu.vector_store %arg7[%c0_28, %c0_29], %52 {strides = array<i32>} : memref<2x128xf32, #tpu.memory_space<vmem>>, vector<2x128xf32>,
    } else {
    }
    return
  }
  func.func @transform_0(%arg0: i32, %arg1: i32) -> (i32, i32, i32) {
    %c0_i32 = arith.constant 0 : i32
    %c0_i32_0 = arith.constant 0 : i32
    return %arg0, %c0_i32, %arg1 : i32, i32, i32
  }
  func.func @transform_1(%arg0: i32, %arg1: i32) -> (i32, i32) {
    %c0_i32 = arith.constant 0 : i32
    %c0_i32_0 = arith.constant 0 : i32
    %c0_i32_1 = arith.constant 0 : i32
    return %c0_i32, %c0_i32_0 : i32, i32
  }
  func.func @transform_2(%arg0: i32, %arg1: i32) -> (i32, i32) {
    %c0_i32 = arith.constant 0 : i32
    %c0_i32_0 = arith.constant 0 : i32
    %c0_i32_1 = arith.constant 0 : i32
    return %c0_i32, %c0_i32_0 : i32, i32
  }
  func.func @transform_3(%arg0: i32, %arg1: i32) -> (i32, i32) {
    %c0_i32 = arith.constant 0 : i32
    %c0_i32_0 = arith.constant 0 : i32
    return %arg0, %c0_i32 : i32, i32
  }
  func.func @transform_4(%arg0: i32, %arg1: i32) -> (i32, i32) {
    %c0_i32 = arith.constant 0 : i32
    %c0_i32_0 = arith.constant 0 : i32
    return %arg0, %c0_i32 : i32, i32
  }
  func.func @transform_5(%arg0: i32, %arg1: i32) -> (i32, i32) {
    %c0_i32 = arith.constant 0 : i32
    %c0_i32_0 = arith.constant 0 : i32
    return %arg0, %c0_i32 : i32, i32
  }
}

</mosaic_0001>

<llo_original>
// kernel: pool_fc_entropy.1
$region0: #{pool_fc_entropy.1}
  #allocation0 [shape = 'u32[]', space=smem, size = 0x4, offset = 0x4, fixed_abs, tag = 'smem constant byte address 0x4 - core index']
  #allocation1 [shape = 'u32[144,128]{1,0:T(1,128)}', space=vmem, size = 0x12000, scoped, tag = 'internal scratch']
  #allocation2 [shape = 'f32[2,32]{1,0:T(2,128)}', space=vmem, size = 0x400, scoped, tag = 'scratch operand']
  %s0 = inlined_call_operand.vmem [shape: f32[2,32,64], index: 0, kind: input, shape index: {}]
  %s1 = inlined_call_operand.vmem [shape: bf16[128,32], index: 1, kind: input, shape index: {}]
  %s2 = inlined_call_operand.vmem [shape: f32[1,128], index: 2, kind: input, shape index: {}]
  %s3 = inlined_call_operand.hbm [shape: f32[2,32], index: 3, kind: output, shape index: {0}]
  %s4 = inlined_call_operand.hbm [shape: f32[2,128], index: 4, kind: output, shape index: {1}]
  %s5 = inlined_call_operand.vmem [shape: f32[2,128], index: 5, kind: output, shape index: {2}]
  %6 = xla_tuple %s3, %s4, %s5
  %s7 = sld [smem:[#allocation0]]
  $region46: #{pool_fc_entropy.1} parent=0
    _
  %s9 = ssub.s32 1, %s7
  %s10 = scalar_select 0, %s9, %s7
  $region1: #{pool_fc_entropy.1} parent=0
    #allocation3 [shape = 'u8[1024]{0}', space=vmem, size = 0x400, scoped, tag = 'output window, operand 0, single buffered']
    #allocation4 [shape = 's32[1]{0}', space=sflag, size = 0x4, scoped, tag = 'scoped memory for pool_fc_entropy.1']
    #allocation5 [shape = 'u8[1024]{0}', space=vmem, size = 0x400, scoped, tag = 'output window, operand 1, single buffered']
    #allocation6 [shape = 's32[1]{0}', space=sflag, size = 0x4, scoped, tag = 'scoped memory for pool_fc_entropy.1']
    %11 = vsyncpa [#allocation4], 0
    %12 = vsyncpa [#allocation6], 0
    // Predicated region
    $region2: #{pool_fc_entropy.1} parent=1 // pred_check
      _
    $region3: #{pool_fc_entropy.1} parent=1 // pred_check_branch
      %14 = sbr.rel (0) target = $region5
    $region4: #{pool_fc_entropy.1} parent=1 // pred_region
      _
    $region5: #{pool_fc_entropy.1} parent=1 // pred_fallthru
      _
    // Predicated region
    $region6: #{pool_fc_entropy.1} parent=1 // pred_check
      _
    $region7: #{pool_fc_entropy.1} parent=1 // pred_check_branch
      %16 = sbr.rel (0) target = $region9
    $region8: #{pool_fc_entropy.1} parent=1 // pred_region
      _
    $region9: #{pool_fc_entropy.1} parent=1 // pred_fallthru
      _
    // Predicated region
    $region10: #{pool_fc_entropy.1} parent=1 // pred_check
      _
    $region11: #{pool_fc_entropy.1} parent=1 // pred_check_branch
      %18 = sbr.rel (0) target = $region13
    $region12: #{pool_fc_entropy.1} parent=1 // pred_region
      _
    $region13: #{pool_fc_entropy.1} parent=1 // pred_fallthru
      _
    %p20 = scmp.eq.s32.totalorder 0, 0
    // Predicated region
    $region14: #{pool_fc_entropy.1} parent=1 // pred_check
      %p21 = pneg %p20
    $region15: #{pool_fc_entropy.1} parent=1 // pred_check_branch
      %23 = sbr.rel (%p21) target = $region17
    $region16: #{pool_fc_entropy.1} parent=1 // pred_region
      %vm24 = vcmask 254976
      %25 = vst.msk [vmem:[#allocation2] sm:$0x3] %vm24, 0.0
    $region17: #{pool_fc_entropy.1} parent=1 // pred_fallthru
      _
    %v26 = vld [vmem:[%s0] sm:$0xff]
    %v27 = vld [vmem:[%s0 + $0x8] sm:$0xff]
    %v28 = vld [vmem:[%s0 + $0x10] sm:$0xff]
    %v29 = vld [vmem:[%s0 + $0x18] sm:$0xff]
    %v30 = vld [vmem:[%s0 + $0x20] sm:$0xff]
    %v31 = vld [vmem:[%s0 + $0x28] sm:$0xff]
    %v32 = vld [vmem:[%s0 + $0x30] sm:$0xff]
    %v33 = vld [vmem:[%s0 + $0x38] sm:$0xff]
    %v34 = vld [vmem:[#allocation2] sm:$0x3]
    %vm35 = vcmask 523264
    %v36 = vsel %vm35, %v26, 0.0
    %37 = vadd.xlane.f32.xlu0 %v36
    %v38 = vpop.xlane.xlu0 %37
    %v39 = vsel %vm35, %v27, 0.0
    %40 = vadd.xlane.f32.xlu0 %v39
    %v41 = vpop.xlane.xlu0 %40
    %v42 = vsel %vm35, %v28, 0.0
    %43 = vadd.xlane.f32.xlu0 %v42
    %v44 = vpop.xlane.xlu0 %43
    %v45 = vsel %vm35, %v29, 0.0
    %46 = vadd.xlane.f32.xlu0 %v45
    %v47 = vpop.xlane.xlu0 %46
    %v48 = vsel %vm35, %v30, 0.0
    %49 = vadd.xlane.f32.xlu0 %v48
    %v50 = vpop.xlane.xlu0 %49
    %v51 = vsel %vm35, %v31, 0.0
    %52 = vadd.xlane.f32.xlu0 %v51
    %v53 = vpop.xlane.xlu0 %52
    %v54 = vsel %vm35, %v32, 0.0
    %55 = vadd.xlane.f32.xlu0 %v54
    %v56 = vpop.xlane.xlu0 %55
    %v57 = vsel %vm35, %v33, 0.0
    %58 = vadd.xlane.f32.xlu0 %v57
    %v59 = vpop.xlane.xlu0 %58
    %v68 = vlaneseq
    %v69 = vand.u32 %v68, 127
    %v70 = vlaneseq
    %v71 = vshrl.u32 %v70, 7
    %v72 = vsub.s32 %v69, %v71
    %v73 = vrot.slane %v38, %v72
    %v74 = vadd.s32 %v69, 4294967288
    %v75 = vlaneseq
    %v76 = vshrl.u32 %v75, 7
    %v77 = vsub.s32 %v74, %v76
    %v78 = vrot.slane %v41, %v77
    %vm79 = vcmask 130112
    %v80 = vsel %vm79, %v78, %v73
    %v81 = vadd.s32 %v69, 4294967280
    %v82 = vlaneseq
    %v83 = vshrl.u32 %v82, 7
    %v84 = vsub.s32 %v81, %v83
    %v85 = vrot.slane %v44, %v84
    %vm86 = vcmask 195712
    %v87 = vsel %vm86, %v85, %v80
    %v88 = vadd.s32 %v69, 4294967272
    %v89 = vlaneseq
    %v90 = vshrl.u32 %v89, 7
    %v91 = vsub.s32 %v88, %v90
    %v92 = vrot.slane %v47, %v91
    %vm93 = vcmask 261312
    %v94 = vsel %vm93, %v92, %v87
    %v95 = vlaneseq
    %v96 = vshrl.u32 %v95, 7
    %v97 = vsub.s32 %v69, %v96
    %v98 = vrot.slane %v50, %v97
    %v99 = vlaneseq
    %v100 = vshrl.u32 %v99, 7
    %v101 = vsub.s32 %v74, %v100
    %v102 = vrot.slane %v53, %v101
    %v103 = vsel %vm79, %v102, %v98
    %v104 = vlaneseq
    %v105 = vshrl.u32 %v104, 7
    %v106 = vsub.s32 %v81, %v105
    %v107 = vrot.slane %v56, %v106
    %v108 = vsel %vm86, %v107, %v103
    %v109 = vlaneseq
    %v110 = vshrl.u32 %v109, 7
    %v111 = vsub.s32 %v88, %v110
    %v112 = vrot.slane %v59, %v111
    %v113 = vsel %vm93, %v112, %v108
    %vm114 = vcmask 1041409
    %v115 = vsel %vm114, %v113, %v94
    %v117 = vadd.f32 %v34, %v115
    %vm118 = vcmask 254976
    %119 = vst.msk [vmem:[#allocation2] sm:$0x3] %vm118, %v117
    // Predicated region
    $region18: #{pool_fc_entropy.1} parent=1 // pred_check
      %p120 = pneg %p20
    $region19: #{pool_fc_entropy.1} parent=1 // pred_check_branch
      %122 = sbr.rel (%p120) target = $region21
    $region20: #{pool_fc_entropy.1} parent=1 // pred_region
      %v123 = vld [vmem:[#allocation2] sm:$0x3]
      %v124 = vmul.f32 %v123, 0.015625
      %125 = vst.msk [vmem:[#allocation3] sm:$0x3] %vm118, %v124
      %v126 = vld [vmem:[%s1] sm:$0xf]
      %v127 = vld [vmem:[%s1 + $0x4] sm:$0xf]
      %v128 = vld [vmem:[%s1 + $0x8] sm:$0xf]
      %v129 = vld [vmem:[%s1 + $0xc] sm:$0xf]
      %v130 = vld [vmem:[%s1 + $0x10] sm:$0xf]
      %v131 = vld [vmem:[%s1 + $0x14] sm:$0xf]
      %v132 = vld [vmem:[%s1 + $0x18] sm:$0xf]
      %v133 = vld [vmem:[%s1 + $0x1c] sm:$0xf]
      %v134 = vld [vmem:[%s1 + $0x20] sm:$0xf]
      %v135 = vld [vmem:[%s1 + $0x24] sm:$0xf]
      %v136 = vld [vmem:[%s1 + $0x28] sm:$0xf]
      %v137 = vld [vmem:[%s1 + $0x2c] sm:$0xf]
      %v138 = vld [vmem:[%s1 + $0x30] sm:$0xf]
      %v139 = vld [vmem:[%s1 + $0x34] sm:$0xf]
      %v140 = vld [vmem:[%s1 + $0x38] sm:$0xf]
      %v141 = vld [vmem:[%s1 + $0x3c] sm:$0xf]
      %v142 = vpack.c.bf16 %v124, %v124
      %v143 = vld [vmem:[%s2] sm:$0x1]
      %v145 = vlaneseq
      %v146 = vshrl.u32 %v145, 7
      %v147 = vsub.s32 0, %v146
      %v148 = vrot.slane %v143, %v147
      %v166 = vunpack.c.l.b16 %v126
      %v167 = vunpack.c.l.b16 %v127
      %v168 = vunpack.c.l.b16 %v128
      %v169 = vunpack.c.l.b16 %v129
      %v170 = vunpack.c.l.b16 %v130
      %v171 = vunpack.c.l.b16 %v131
      %v172 = vunpack.c.l.b16 %v132
      %v173 = vunpack.c.l.b16 %v133
      %v174 = vunpack.c.l.b16 %v134
      %v175 = vunpack.c.l.b16 %v135
      %v176 = vunpack.c.l.b16 %v136
      %v177 = vunpack.c.l.b16 %v137
      %v178 = vunpack.c.l.b16 %v138
      %v179 = vunpack.c.l.b16 %v139
      %v180 = vunpack.c.l.b16 %v140
      %v181 = vunpack.c.l.b16 %v141
      %v182 = vpack.c.b16 %v167, %v166
      %v183 = vpack.c.b16 %v169, %v168
      %v184 = vpack.c.b16 %v171, %v170
      %v185 = vpack.c.b16 %v173, %v172
      %v186 = vpack.c.b16 %v175, %v174
      %v187 = vpack.c.b16 %v177, %v176
      %v188 = vpack.c.b16 %v179, %v178
      %v189 = vpack.c.b16 %v181, %v180
      %vm190 = vcmask 261120
      %v192 = vsel %vm190, %v142, 0
      %v195 = vsel %vm190, %v182, 0
      %v198 = vsel %vm190, %v183, 0
      %v201 = vsel %vm190, %v184, 0
      %v204 = vsel %vm190, %v185, 0
      %v207 = vsel %vm190, %v186, 0
      %v210 = vsel %vm190, %v187, 0
      %v213 = vsel %vm190, %v188, 0
      %v216 = vsel %vm190, %v189, 0
      %218 = vmatprep.subr.bf16.mxu0 0
      %219 = vmatpush1.bf16.xpose.msra.mxu0 %v216
      %220 = vmatprep.subr.bf16.mxu0 0
      %221 = vmatpush1.bf16.xpose.msra.mxu0 %v213
      %222 = vmatprep.subr.bf16.mxu0 0
      %223 = vmatpush1.bf16.xpose.msra.mxu0 %v210
      %224 = vmatprep.subr.bf16.mxu0 0
      %225 = vmatpush1.bf16.xpose.msra.mxu0 %v207
      %226 = vmatprep.subr.bf16.mxu0 0
      %227 = vmatpush1.bf16.xpose.msra.mxu0 %v204
      %228 = vmatprep.subr.bf16.mxu0 0
      %229 = vmatpush1.bf16.xpose.msra.mxu0 %v201
      %230 = vmatprep.subr.bf16.mxu0 0
      %231 = vmatpush1.bf16.xpose.msra.mxu0 %v198
      %232 = vmatprep.subr.bf16.mxu0 0
      %233 = vmatpush1.bf16.xpose.msra.mxu0 %v195
      %234 = vmatprep.subr.bf16.mxu0 0
      %235 = vmatpush2.bf16.xpose.msra.mxu0 0
      %236 = vmatprep.subr.bf16.mxu0 0
      %237 = vmatpush2.bf16.xpose.msra.mxu0 0
      %238 = vmatprep.subr.bf16.mxu0 0
      %239 = vmatpush2.bf16.xpose.msra.mxu0 0
      %240 = vmatprep.subr.bf16.mxu0 0
      %241 = vmatpush2.bf16.xpose.msra.mxu0 0
      %242 = vmatprep.subr.bf16.mxu0 0
      %243 = vmatpush2.bf16.xpose.msra.mxu0 0
      %244 = vmatprep.subr.bf16.mxu0 0
      %245 = vmatpush2.bf16.xpose.msra.mxu0 0
      %246 = vmatprep.subr.bf16.mxu0 0
      %247 = vmatpush2.bf16.xpose.msra.mxu0 0
      %248 = vmatprep.subr.bf16.mxu0 0
      %249 = vmatpush2.bf16.xpose.msra.mxu0 0
      %250 = vmatprep.mubr.bf16.mxu0 0
      %251 = vmatmul.mubr.bf16.gmra.mxu0 %v192
      %v252 = vpop.f32.mrf.mxu0
      %v253 = vadd.f32 %v148, %v252
      %v254 = vpop.f32.mrf.mxu0
      %v255 = vpop.f32.mrf.mxu0
      %v256 = vpop.f32.mrf.mxu0
      %257 = vdwg.mxu0
      %258 = vst [vmem:[#allocation5] sm:$0x3] %v253
      %vm259 = vcmp.lt.s32.totalorder %v69, 4
      %v260 = vsel %vm259, %v253, -1e+30
      %vm261 = vcmask 1041408
      %v262 = vsel %vm261, %v260, -inf
      %263 = vmax.xlane.f32.xlu0 %v262
      %v264 = vpop.xlane.xlu0 %263
      %v265 = vsub.f32 %v253, %v264
      %v266 = vmul.f32 %v265, 1.442695
      %v267 = vpow.pop %v266
      %v268 = vsel %vm259, %v267, 0.0
      %v269 = vsel %vm261, %v268, 0.0
      %270 = vadd.xlane.f32.xlu0 %v269
      %v271 = vpop.xlane.xlu0 %270
      %v272 = vrcp.pop %v271
      %v273 = vlog2.pop %v271
      %v274 = vmul.f32 %v273, 0.6931472
      %v275 = vsub.f32 %v265, %v274
      %v276 = vmul.f32 %v268, %v272
      %v277 = vmul.f32 %v276, %v275
      %v278 = vsel %vm259, %v277, 0.0
      %v279 = vsel %vm261, %v278, 0.0
      %280 = vadd.xlane.f32.xlu0 %v279
      %v281 = vpop.xlane.xlu0 %280
      %v282 = vsub.f32 0.0, %v281
      %283 = vst [vmem:[%s5] sm:$0x3] %v282
    $region21: #{pool_fc_entropy.1} parent=1 // pred_fallthru
      _
    // Predicated region
    $region22: #{pool_fc_entropy.1} parent=1 // pred_check
      _
    $region23: #{pool_fc_entropy.1} parent=1 // pred_check_branch
      %285 = sbr.rel (0) target = $region25
    $region24: #{pool_fc_entropy.1} parent=1 // pred_region
      %s287 = ssub.s32 32, 32
      %288 = vsyncadd [#allocation4], %s287
      %s290 = sshll.u32 [#allocation3], 4
      %s291 = int_to_ptr.vmem [resolvable:$true] %s290
      %293 = dma.vmem_to_hbm [thread:$0]  %s291, 32, %s3, [#allocation4]
    $region25: #{pool_fc_entropy.1} parent=1 // pred_fallthru
      _
    // Predicated region
    $region26: #{pool_fc_entropy.1} parent=1 // pred_check
      _
    $region27: #{pool_fc_entropy.1} parent=1 // pred_check_branch
      %295 = sbr.rel (0) target = $region29
    $region28: #{pool_fc_entropy.1} parent=1 // pred_region
      %s297 = ssub.s32 32, 32
      %298 = vsyncadd [#allocation6], %s297
      %s300 = sshll.u32 [#allocation5], 4
      %s301 = int_to_ptr.vmem [resolvable:$true] %s300
      %303 = dma.vmem_to_hbm [thread:$0]  %s301, 32, %s4, [#allocation6]
    $region29: #{pool_fc_entropy.1} parent=1 // pred_fallthru
      _
    // Predicated region
    $region30: #{pool_fc_entropy.1} parent=1 // pred_check
      _
    $region31: #{pool_fc_entropy.1} parent=1 // pred_check_branch
      %305 = sbr.rel (0) target = $region33
    $region32: #{pool_fc_entropy.1} parent=1 // pred_region
      _
    $region33: #{pool_fc_entropy.1} parent=1 // pred_fallthru
      _
    // Predicated region
    $region34: #{pool_fc_entropy.1} parent=1 // pred_check
      _
    $region35: #{pool_fc_entropy.1} parent=1 // pred_check_branch
      %307 = sbr.rel (0) target = $region37
    $region36: #{pool_fc_entropy.1} parent=1 // pred_region
      %308 = dma.done [#allocation4], 32
    $region37: #{pool_fc_entropy.1} parent=1 // pred_fallthru
      _
    // Predicated region
    $region38: #{pool_fc_entropy.1} parent=1 // pred_check
      _
    $region39: #{pool_fc_entropy.1} parent=1 // pred_check_branch
      %310 = sbr.rel (0) target = $region41
    $region40: #{pool_fc_entropy.1} parent=1 // pred_region
      %311 = dma.done [#allocation6], 32
    $region41: #{pool_fc_entropy.1} parent=1 // pred_fallthru
      _
    // Predicated region
    $region42: #{pool_fc_entropy.1} parent=1 // pred_check
      _
    $region43: #{pool_fc_entropy.1} parent=1 // pred_check_branch
      %313 = sbr.rel (0) target = $region45
    $region44: #{pool_fc_entropy.1} parent=1 // pred_region
      _
    $region45: #{pool_fc_entropy.1} parent=1 // pred_fallthru
      _
    %314 = vsyncpa [#allocation4], 1
    %315 = vsyncpa [#allocation6], 1

</llo_original>
